<compile_context>
chip_gen: v7x
topology: tpu7x:2x2x1
jax: 0.10.0
libtpu: 0.0.40
codegen_flags: <defaults>
</compile_context>

<pallas_src>
import jax
import jax.numpy as jnp
from jax.experimental import pallas as pl
from jax.experimental.pallas import tpu as pltpu

_LANES = 128


def _round_up(n, m):
    return ((n + m - 1) // m) * m


def _pad_cols(a, target):
    pad = target - a.shape[-1]
    return a if pad == 0 else jnp.pad(a, ((0, 0), (0, pad)))


# ----------------------------------------------------------------------------
# Kernel 1: fused single Linear with bias folded into the weight slab.
#   x:  (N, K)          wb: (K+1, Cp)   [rows 0..K-1 = W, row K = bias]
#   out (N, Cp)         Cp is a multiple of 128 (lane-dense store)
# ----------------------------------------------------------------------------
def _linear_fused_kernel(x_ref, wb_ref, o_ref):
    x = x_ref[...]
    wb = wb_ref[...]
    k = x.shape[-1]
    o = jnp.dot(x, wb[:k, :], preferred_element_type=jnp.float32) + wb[k:, :]
    o_ref[...] = o.astype(o_ref.dtype)


# ----------------------------------------------------------------------------
# Kernel 2: classifier MLP (mlp_layers=2): Linear -> ReLU -> Linear,
#           final_act=False, dropout=identity.  Biases folded as final rows.
#   x: (N, H)  wb1: (H+1, H)  wb2: (H+1, Tp)  out: (N, Tp), Tp multiple of 128
# ----------------------------------------------------------------------------
def _mlp2_fused_kernel(x_ref, wb1_ref, wb2_ref, o_ref):
    x = x_ref[...]
    wb1 = wb1_ref[...]
    wb2 = wb2_ref[...]
    k1 = x.shape[-1]
    h = jnp.dot(x, wb1[:k1, :], preferred_element_type=jnp.float32) + wb1[k1:, :]
    h = jnp.maximum(h, 0.0)                                  # hidden ReLU
    k2 = h.shape[-1]
    o = jnp.dot(h, wb2[:k2, :], preferred_element_type=jnp.float32) + wb2[k2:, :]
    o_ref[...] = o.astype(o_ref.dtype)


_VMEM_SPEC = pl.BlockSpec(memory_space=pltpu.MemorySpace.VMEM)


# ----------------------------------------------------------------------------
# Wrappers
# ----------------------------------------------------------------------------
def fp_aligners(fp_embeddings, fp_w, fp_b):
    """fp_embeddings: [N, L, H]; fp_w: [L, H, F]; fp_b: [L, 1, F] -> [N, L, F].

    Equivalent to torch.stack([aligner_l(fp_embeddings[:, l])], dim=1), but
    computed as ONE matmul against a block-diagonal weight (K = L*H feeds the
    MXU contraction better than per-layer K=H, esp. on v5e's 128-wide MXU).
    """
    N, L, H = fp_embeddings.shape
    F = fp_w.shape[-1]
    K, C = L * H, L * F
    Cp = _round_up(C, _LANES)

    # Block-diagonal weight [L*H, L*F] (weight prep; in a real model this is
    # done once at load time, not per forward).  Bias folded as the last row.
    w_bd = jnp.einsum(
        "lhf,lm->lhmf", fp_w, jnp.eye(L, dtype=fp_w.dtype)
    ).reshape(K, C)
    b_row = fp_b.reshape(1, C)
    wb = _pad_cols(jnp.concatenate([w_bd, b_row], axis=0), Cp)   # [K+1, Cp]

    x_flat = fp_embeddings.reshape(N, K)                         # contiguous, free

    out = pl.pallas_call(
        _linear_fused_kernel,
        out_shape=jax.ShapeDtypeStruct((N, Cp), jnp.float32),
        in_specs=[_VMEM_SPEC, _VMEM_SPEC],
        out_specs=_VMEM_SPEC,
    )(x_flat, wb)
    return out[:, :C].reshape(N, L, F)                           # stack dim=1


def classifier_mlp(x, w1, b1, w2, b2):
    """x: [N, H], w1: [H, H], b1: [1, H], w2: [H, T], b2: [1, T] -> [N, T]."""
    N, H = x.shape
    T = w2.shape[1]
    Tp = _round_up(T, _LANES)

    wb1 = jnp.concatenate([w1, b1], axis=0)                      # [H+1, H]
    wb2 = _pad_cols(jnp.concatenate([w2, b2], axis=0), Tp)       # [H+1, Tp]

    out = pl.pallas_call(
        _mlp2_fused_kernel,
        out_shape=jax.ShapeDtypeStruct((N, Tp), jnp.float32),
        in_specs=[_VMEM_SPEC, _VMEM_SPEC, _VMEM_SPEC],
        out_specs=_VMEM_SPEC,
    )(x, wb1, wb2)
    return out[:, :T]


# ----------------------------------------------------------------------------
# MISU forward (both task types)
# ----------------------------------------------------------------------------
def misu_forward_pretrain(embeddings, fp_embeddings, fp_w, fp_b):
    # task_type == 'pretrain' and optimize_fp == True
    fp_aligned = fp_aligners(fp_embeddings, fp_w, fp_b)
    return embeddings, fp_aligned


def misu_forward_finetune(embeddings, w1, b1, w2, b2):
    # task_type != 'pretrain': classifier MLP on encoder embeddings
    return classifier_mlp(embeddings, w1, b1, w2, b2)


if __name__ == "__main__":
    # Small hparams consistent with the module:
    #   hidden_channels=32, num_layers=3 (=> L=2 fp_aligners),
    #   mgf_dim + maccs_dim = 64, mlp_layers=2, num_tasks=8, batch N=8 graphs.
    N, H, L, F, T = 8, 32, 2, 64, 8

    key = jax.random.PRNGKey(0)
    k = jax.random.split(key, 8)

    # "encoder outputs" (stand-in; encoder is external to MISU)
    embeddings = jax.random.normal(k[0], (N, H), dtype=jnp.float32)
    fp_embeddings = jax.random.normal(k[1], (N, L, H), dtype=jnp.float32)

    # fp_aligners: L single-layer Linear(H -> F) heads
    fp_w = jax.random.normal(k[2], (L, H, F), dtype=jnp.float32) * 0.05
    fp_b = jax.random.normal(k[3], (L, 1, F), dtype=jnp.float32) * 0.01

    # classifier MLP: Linear(H->H) -> ReLU -> Linear(H->T)
    w1 = jax.random.normal(k[4], (H, H), dtype=jnp.float32) * 0.05
    b1 = jax.random.normal(k[5], (1, H), dtype=jnp.float32) * 0.01
    w2 = jax.random.normal(k[6], (H, T), dtype=jnp.float32) * 0.05
    b2 = jax.random.normal(k[7], (1, T), dtype=jnp.float32) * 0.01

    # --- pretrain path ---
    emb_out, fp_out = misu_forward_pretrain(embeddings, fp_embeddings, fp_w, fp_b)
    jax.block_until_ready(emb_out)
    jax.block_until_ready(fp_out)

    # reference check (pure JAX)
    fp_ref = jnp.einsum("nlh,lhf->nlf", fp_embeddings, fp_w) + jnp.transpose(
        fp_b, (1, 0, 2)
    )
    assert fp_out.shape == (N, L, F)
    assert jnp.allclose(fp_out, fp_ref, atol=1e-4), "fp_aligner mismatch"

    # --- finetune path ---
    logits = misu_forward_finetune(embeddings, w1, b1, w2, b2)
    jax.block_until_ready(logits)

    h_ref = jnp.maximum(embeddings @ w1 + b1, 0.0)
    logits_ref = h_ref @ w2 + b2
    assert logits.shape == (N, T)
    assert jnp.allclose(logits, logits_ref, atol=1e-4), "classifier mismatch"

    print("KERNEL_OK")
</pallas_src>

<mosaic_0001>
module attributes {stable_mosaic.version = 11 : i64} {
  func.func @_linear_fused_kernel(%arg0: memref<8x64xf32, #tpu.memory_space<vmem>>, %arg1: memref<65x128xf32, #tpu.memory_space<vmem>>, %arg2: memref<8x128xf32, #tpu.memory_space<vmem>>) attributes {dimension_semantics = [], scalar_prefetch = 0 : i64, scratch_operands = 0 : i64, tpu.core_type = #tpu.core_type<tc>} {
    %c0 = arith.constant 0 : index
    %c0_0 = arith.constant 0 : index
    %0 = vector.load %arg0[%c0, %c0_0] : memref<8x64xf32, #tpu.memory_space<vmem>>, vector<8x64xf32>
    %c0_1 = arith.constant 0 : index
    %c0_2 = arith.constant 0 : index
    %1 = vector.load %arg1[%c0_1, %c0_2] : memref<65x128xf32, #tpu.memory_space<vmem>>, vector<65x128xf32>
    %2 = vector.extract_strided_slice %1 {offsets = [0, 0], sizes = [64, 128], strides = [1, 1]} : vector<65x128xf32> to vector<64x128xf32>
    %cst = arith.constant dense<0.000000e+00> : vector<8x128xf32>
    %3 = tpu.matmul %0, %2, %cst {dimension_numbers = #tpu.dot_dimension_numbers<[1], [0], [0], [1], [0, 0, 1, 1], [], []>} : vector<8x64xf32>, vector<64x128xf32>, vector<8x128xf32> -> vector<8x128xf32>
    %4 = vector.extract_strided_slice %1 {offsets = [64, 0], sizes = [1, 128], strides = [1, 1]} : vector<65x128xf32> to vector<1x128xf32>
    %5 = vector.broadcast %4 : vector<1x128xf32> to vector<8x128xf32>
    %6 = arith.addf %3, %5 : vector<8x128xf32>
    %c0_3 = arith.constant 0 : index
    %c0_4 = arith.constant 0 : index
    %7 = vector.load %arg2[%c0_3, %c0_4] : memref<8x128xf32, #tpu.memory_space<vmem>>, vector<8x128xf32>
    tpu.vector_store %arg2[%c0_3, %c0_4], %6 {strides = array<i32>} : memref<8x128xf32, #tpu.memory_space<vmem>>, vector<8x128xf32>,
    return
  }
}

</mosaic_0001>

<llo_original>
// kernel: tpu_custom_call.1
$region0: #{tpu_custom_call.1}
  #allocation0 [shape = 'u32[]', space=smem, size = 0x4, offset = 0x4, fixed_abs, tag = 'smem constant byte address 0x4 - core index']
  #allocation1 [shape = 'u32[144,128]{1,0:T(1,128)}', space=vmem, size = 0x12000, scoped, tag = 'internal scratch']
  %s0 = inlined_call_operand.hbm [shape: f32[8,64], index: 0, kind: input, shape index: {}]
  %s1 = inlined_call_operand.hbm [shape: f32[65,128], index: 1, kind: input, shape index: {}]
  %s2 = inlined_call_operand.hbm [shape: f32[8,128], index: 2, kind: output, shape index: {}]
  %s3 = sld [smem:[#allocation0]]
  $region26: #{tpu_custom_call.1} parent=0
    _
  %s5 = ssub.s32 1, %s3
  %s6 = scalar_select 0, %s5, %s3
  $region1: #{tpu_custom_call.1} parent=0
    #allocation2 [shape = 'u8[4096]{0}', space=vmem, size = 0x1000, scoped, tag = 'input window, operand 0, single buffered']
    #allocation3 [shape = 's32[1]{0}', space=sflag, size = 0x4, scoped, tag = 'scoped memory for tpu_custom_call.1']
    #allocation4 [shape = 's32[1]{0}', space=sflag, size = 0x4, scoped, tag = 'scoped memory for tpu_custom_call.1']
    #allocation5 [shape = 'u8[36864]{0}', space=vmem, size = 0x9000, scoped, tag = 'input window, operand 1, single buffered']
    #allocation6 [shape = 's32[1]{0}', space=sflag, size = 0x4, scoped, tag = 'scoped memory for tpu_custom_call.1']
    #allocation7 [shape = 'u8[4096]{0}', space=vmem, size = 0x1000, scoped, tag = 'output window, operand 0, single buffered']
    %7 = vsyncpa [#allocation3], 0
    %8 = vsyncpa [#allocation6], 0
    %9 = vsyncpa [#allocation4], 0
    // Predicated region
    $region2: #{tpu_custom_call.1} parent=1 // pred_check
      _
    $region3: #{tpu_custom_call.1} parent=1 // pred_check_branch
      %11 = sbr.rel (0) target = $region5
    $region4: #{tpu_custom_call.1} parent=1 // pred_region
      %s13 = ssub.s32 128, 128
      %14 = vsyncadd [#allocation3], %s13
      %s16 = sshll.u32 [#allocation2], 4
      %s17 = int_to_ptr.vmem [resolvable:$true] %s16
      %19 = dma.hbm_to_vmem [thread:$0]  %s0, 128, %s17, [#allocation3]
    $region5: #{tpu_custom_call.1} parent=1 // pred_fallthru
      _
    // Predicated region
    $region6: #{tpu_custom_call.1} parent=1 // pred_check
      _
    $region7: #{tpu_custom_call.1} parent=1 // pred_check_branch
      %21 = sbr.rel (0) target = $region9
    $region8: #{tpu_custom_call.1} parent=1 // pred_region
      %s23 = ssub.s32 1152, 1152
      %24 = vsyncadd [#allocation6], %s23
      %s25 = sshll.u32 [#allocation5], 4
      %s26 = int_to_ptr.vmem [resolvable:$true] %s25
      %31 = dma.hbm_to_vmem [thread:$0]  %s1, 1152, %s26, [#allocation6], 128, 128, 8
    $region9: #{tpu_custom_call.1} parent=1 // pred_fallthru
      _
    // Predicated region
    $region10: #{tpu_custom_call.1} parent=1 // pred_check
      _
    $region11: #{tpu_custom_call.1} parent=1 // pred_check_branch
      %33 = sbr.rel (0) target = $region13
    $region12: #{tpu_custom_call.1} parent=1 // pred_region
      %34 = dma.done [#allocation3], 128
    $region13: #{tpu_custom_call.1} parent=1 // pred_fallthru
      _
    // Predicated region
    $region14: #{tpu_custom_call.1} parent=1 // pred_check
      _
    $region15: #{tpu_custom_call.1} parent=1 // pred_check_branch
      %36 = sbr.rel (0) target = $region17
    $region16: #{tpu_custom_call.1} parent=1 // pred_region
      %37 = dma.done [#allocation6], 1152
    $region17: #{tpu_custom_call.1} parent=1 // pred_fallthru
      _
    %v38 = vld [vmem:[#allocation2] sm:$0xff]
    %v39 = vld [vmem:[#allocation5] sm:$0xff]
    %v40 = vld [vmem:[#allocation5 + $0x8] sm:$0xff]
    %v41 = vld [vmem:[#allocation5 + $0x10] sm:$0xff]
    %v42 = vld [vmem:[#allocation5 + $0x18] sm:$0xff]
    %v43 = vld [vmem:[#allocation5 + $0x20] sm:$0xff]
    %v44 = vld [vmem:[#allocation5 + $0x28] sm:$0xff]
    %v45 = vld [vmem:[#allocation5 + $0x30] sm:$0xff]
    %v46 = vld [vmem:[#allocation5 + $0x38] sm:$0xff]
    %v47 = vld [vmem:[#allocation5 + $0x40] sm:$0x1]
    %v48 = vlaneseq
    %v49 = vshrl.u32 %v48, 7
    %v50 = vsub.s32 0, %v49
    %v51 = vrot.slane %v47, %v50
    %vm52 = vcmask 523264
    %v54 = vsel %vm52, %v38, 0
    %56 = vmatprep.subr.mxu0 0.0
    %57 = vmatpush1.msra.mxu0 %v39
    %58 = vmatprep.subr.mxu0 0.0
    %59 = vmatpush1.msra.mxu0 %v40
    %60 = vmatprep.subr.mxu0 0.0
    %61 = vmatpush1.msra.mxu0 %v41
    %62 = vmatprep.subr.mxu0 0.0
    %63 = vmatpush1.msra.mxu0 %v42
    %64 = vmatprep.subr.mxu0 0.0
    %65 = vmatpush1.msra.mxu0 %v43
    %66 = vmatprep.subr.mxu0 0.0
    %67 = vmatpush1.msra.mxu0 %v44
    %68 = vmatprep.subr.mxu0 0.0
    %69 = vmatpush1.msra.mxu0 %v45
    %70 = vmatprep.subr.mxu0 0.0
    %71 = vmatpush1.msra.mxu0 %v46
    %72 = vmatprep.subr.mxu0 0.0
    %73 = vmatpush1.msra.mxu0 0.0
    %74 = vmatprep.subr.mxu0 0.0
    %75 = vmatpush1.msra.mxu0 0.0
    %76 = vmatprep.subr.mxu0 0.0
    %77 = vmatpush1.msra.mxu0 0.0
    %78 = vmatprep.subr.mxu0 0.0
    %79 = vmatpush1.msra.mxu0 0.0
    %80 = vmatprep.subr.mxu0 0.0
    %81 = vmatpush1.msra.mxu0 0.0
    %82 = vmatprep.subr.mxu0 0.0
    %83 = vmatpush1.msra.mxu0 0.0
    %84 = vmatprep.subr.mxu0 0.0
    %85 = vmatpush1.msra.mxu0 0.0
    %86 = vmatprep.subr.mxu0 0.0
    %87 = vmatpush1.msra.mxu0 0.0
    %88 = vmatprep.subr.mxu0 0.0
    %89 = vmatpush1.msra.mxu0 0.0
    %90 = vmatprep.subr.mxu0 0.0
    %91 = vmatpush1.msra.mxu0 0.0
    %92 = vmatprep.subr.mxu0 0.0
    %93 = vmatpush1.msra.mxu0 0.0
    %94 = vmatprep.subr.mxu0 0.0
    %95 = vmatpush1.msra.mxu0 0.0
    %96 = vmatprep.subr.mxu0 0.0
    %97 = vmatpush1.msra.mxu0 0.0
    %98 = vmatprep.subr.mxu0 0.0
    %99 = vmatpush1.msra.mxu0 0.0
    %100 = vmatprep.subr.mxu0 0.0
    %101 = vmatpush1.msra.mxu0 0.0
    %102 = vmatprep.subr.mxu0 0.0
    %103 = vmatpush1.msra.mxu0 0.0
    %104 = vmatprep.subr.mxu0 0.0
    %105 = vmatpush1.msra.mxu0 0.0
    %106 = vmatprep.subr.mxu0 0.0
    %107 = vmatpush1.msra.mxu0 0.0
    %108 = vmatprep.subr.mxu0 0.0
    %109 = vmatpush1.msra.mxu0 0.0
    %110 = vmatprep.subr.mxu0 0.0
    %111 = vmatpush1.msra.mxu0 0.0
    %112 = vmatprep.subr.mxu0 0.0
    %113 = vmatpush1.msra.mxu0 0.0
    %114 = vmatprep.subr.mxu0 0.0
    %115 = vmatpush1.msra.mxu0 0.0
    %116 = vmatprep.subr.mxu0 0.0
    %117 = vmatpush1.msra.mxu0 0.0
    %118 = vmatprep.subr.mxu0 0.0
    %119 = vmatpush1.msra.mxu0 0.0
    %120 = vmatprep.mubr.f32.mxu0 0.0
    %121 = vmatmul.mubr.f32.gmra.mrb[0].mxu0 %v54
    %v122 = vpop.f32.mrb[0].mxu0
    %v123 = vadd.f32 %v51, %v122
    %v124 = vpop.f32.mrb[0].mxu0
    %125 = vdwg.mxu0
    %126 = vst [vmem:[#allocation7] sm:$0xff] %v123
    // Predicated region
    $region18: #{tpu_custom_call.1} parent=1 // pred_check
      _
    $region19: #{tpu_custom_call.1} parent=1 // pred_check_branch
      %128 = sbr.rel (0) target = $region21
    $region20: #{tpu_custom_call.1} parent=1 // pred_region
      %s130 = ssub.s32 128, 128
      %131 = vsyncadd [#allocation4], %s130
      %s133 = sshll.u32 [#allocation7], 4
      %s134 = int_to_ptr.vmem [resolvable:$true] %s133
      %136 = dma.vmem_to_hbm [thread:$0]  %s134, 128, %s2, [#allocation4]
    $region21: #{tpu_custom_call.1} parent=1 // pred_fallthru
      _
    // Predicated region
    $region22: #{tpu_custom_call.1} parent=1 // pred_check
      _
    $region23: #{tpu_custom_call.1} parent=1 // pred_check_branch
      %138 = sbr.rel (0) target = $region25
    $region24: #{tpu_custom_call.1} parent=1 // pred_region
      %139 = dma.done [#allocation4], 128
    $region25: #{tpu_custom_call.1} parent=1 // pred_fallthru
      _
    %140 = vsyncpa [#allocation3], 1
    %141 = vsyncpa [#allocation6], 1
    %142 = vsyncpa [#allocation4], 1

</llo_original>
